<compile_context>
chip_gen: v6e
topology: v6e:2x2x1
jax: 0.10.0
libtpu: 0.0.40
codegen_flags: <defaults>
</compile_context>

<pallas_src>
import functools

import jax
import jax.numpy as jnp
from jax import lax
from jax.experimental import pallas as pl
from jax.experimental.pallas import tpu as pltpu

LANES = 128
SUBLANES = 8
TILE_BYTES_PER_BUFFER = 4 * 1024 * 1024   # per input, per pipeline buffer
VMEM_LIMIT_BYTES = 32 * 1024 * 1024       # 2 in x 2 buf x 4 MiB + headroom
DEFAULT_MIN_KERNEL_ELEMS = 64 * 1024      # below this, XLA fusion wins


def _detect_num_tensorcores():
    """Best-effort TensorCore count (2 on v7x, 1 on v5e/v6e). Defaults to 1."""
    try:
        info = pltpu.get_tpu_info()
    except Exception:
        return 1
    for attr in ("num_cores", "core_count", "num_tensorcores",
                 "num_tensor_cores", "cores_per_chip", "tensorcores_per_chip"):
        v = getattr(info, attr, None)
        if isinstance(v, int) and v > 0:
            return v
    return 1


def _norm_mse_kernel(o_ref, t_ref, out_ref, *, delta, rows, tile_rows,
                     steps_per_core, may_overhang):
    c = pl.program_id(0)   # core ("parallel") axis
    i = pl.program_id(1)   # reduction ("arbitrary") axis

    # out_ref is an (8, 128) f32 block mapped to the same block index for
    # every i, so it stays resident in VMEM across the reduction axis.
    @pl.when(i == 0)
    def _():
        out_ref[...] = jnp.zeros_like(out_ref)

    o = o_ref[...].astype(jnp.float32)
    t = t_ref[...].astype(jnp.float32)

    # norm_output - norm_target == (output - target) / (target + delta):
    # one reciprocal (EUP slot) + multiplies instead of two divides.
    diff = (o - t) * pl.reciprocal(t + delta, approx=False)
    sq = diff * diff

    def _accum(vals):
        # (tile_rows, 128) -> (tile_rows//8, 8, 128); summing the leading dim
        # is plain vreg+vreg VPU adds (no per-step cross-lane XLU reduce).
        out_ref[...] += jnp.sum(
            vals.reshape(tile_rows // SUBLANES, SUBLANES, LANES), axis=0)

    if not may_overhang:
        # Grid covers the rows exactly: no mask work at all.
        _accum(sq)
    else:
        row_start = (c * steps_per_core + i) * tile_rows
        fully_in = row_start + tile_rows <= rows

        @pl.when(fully_in)
        def _():
            _accum(sq)

        @pl.when(jnp.logical_not(fully_in))
        def _():
            # Rows beyond the true row count (partial last tile, or
            # over-covered steps from the core split) contribute zero.  The
            # select (NOT a multiply) discards any NaN/Inf produced from the
            # unspecified out-of-range data.
            row_idx = lax.broadcasted_iota(
                jnp.int32, (tile_rows, 1), 0) + row_start
            _accum(jnp.where(row_idx < rows, sq, 0.0))


def _norm_mse_loss_xla(output, target, delta):
    """Fused XLA path: tiny inputs and non-lane-aligned (ragged) inputs."""
    o = output.astype(jnp.float32)
    t = target.astype(jnp.float32)
    d = (o - t) / (t + delta)
    return jnp.mean(d * d)


def norm_mse_loss(output, target, delta=1.0, *, num_cores=None,
                  min_kernel_elems=DEFAULT_MIN_KERNEL_ELEMS):
    assert output.shape == target.shape, "output/target shape mismatch"
    delta = float(delta)
    n_elems = int(output.size)

    # Fast paths: for small inputs the custom-call launch dominates, and for
    # non-lane-aligned sizes a pad/slice would cost an extra full HBM pass;
    # XLA's fused elementwise+reduce is the better tool there.
    if n_elems == 0 or n_elems % LANES != 0 or n_elems < min_kernel_elems:
        return _norm_mse_loss_xla(output, target, delta)

    rows = n_elems // LANES
    o2 = output.reshape(rows, LANES)   # free, layout-preserving reshape
    t2 = target.reshape(rows, LANES)

    # Tile rows from a fixed byte budget (bf16 automatically gets 2x rows).
    itemsize = int(jnp.dtype(output.dtype).itemsize)
    budget_rows = max(SUBLANES,
                      (TILE_BYTES_PER_BUFFER // (LANES * itemsize))
                      // SUBLANES * SUBLANES)
    rows_up = ((rows + SUBLANES - 1) // SUBLANES) * SUBLANES
    tile_rows = min(budget_rows, rows_up)

    n_blocks = pl.cdiv(rows, tile_rows)

    # Leading "parallel" axis: per-core partial sums on dual-TC parts (v7x);
    # forced to 1 on single-core v5e/v6e so no clamp/mask overhead is added.
    if num_cores is None:
        num_cores = _detect_num_tensorcores()
    num_cores = max(1, min(int(num_cores), n_blocks))
    steps_per_core = pl.cdiv(n_blocks, num_cores)

    # Does the grid over-cover the rows (partial last tile and/or extra steps
    # from the core split)?  If not, the kernel emits no mask code at all.
    may_overhang = (num_cores * steps_per_core * tile_rows != rows)

    if num_cores * steps_per_core == n_blocks:
        in_idx = lambda c, i: (c * steps_per_core + i, 0)
    else:
        # Clamp fully out-of-range steps onto the last real block; the kernel
        # mask (based on the unclamped logical index) zeroes their contribution.
        last_blk = n_blocks - 1
        in_idx = lambda c, i: (jnp.minimum(c * steps_per_core + i, last_blk), 0)

    bytes_accessed = (2 * rows * LANES * itemsize
                      + num_cores * SUBLANES * LANES * 4)

    partials = pl.pallas_call(
        functools.partial(
            _norm_mse_kernel,
            delta=delta,
            rows=rows,
            tile_rows=tile_rows,
            steps_per_core=steps_per_core,
            may_overhang=may_overhang,
        ),
        out_shape=jax.ShapeDtypeStruct((num_cores * SUBLANES, LANES),
                                       jnp.float32),
        grid_spec=pltpu.PrefetchScalarGridSpec(
            num_scalar_prefetch=0,
            grid=(num_cores, steps_per_core),
            in_specs=[
                pl.BlockSpec((tile_rows, LANES), in_idx),
                pl.BlockSpec((tile_rows, LANES), in_idx),
            ],
            out_specs=pl.BlockSpec((SUBLANES, LANES), lambda c, i: (c, 0)),
        ),
        compiler_params=pltpu.CompilerParams(
            dimension_semantics=("parallel", "arbitrary"),
            vmem_limit_bytes=VMEM_LIMIT_BYTES,
        ),
        cost_estimate=pl.CostEstimate(
            flops=5 * n_elems,
            transcendentals=n_elems,
            bytes_accessed=bytes_accessed,
        ),
    )(o2, t2)

    # Mean over the ORIGINAL element count, like nn.MSELoss('mean').
    return jnp.sum(partials) / jnp.float32(n_elems)


def _reference(output, target, delta=1.0):
    denom = target.astype(jnp.float32) + delta
    no = output.astype(jnp.float32) / denom
    nt = target.astype(jnp.float32) / denom
    return jnp.mean((no - nt) ** 2)


if __name__ == "__main__":
    key = jax.random.PRNGKey(0)
    k1, k2, k3, k4 = jax.random.split(key, 4)

    # 1) Small NCHW case (2,4,16,16): force the Pallas path (single block).
    out1 = jax.random.normal(k1, (2, 4, 16, 16), dtype=jnp.float32)
    tgt1 = jax.random.uniform(k2, (2, 4, 16, 16), dtype=jnp.float32) + 0.5
    loss1 = jax.block_until_ready(
        norm_mse_loss(out1, tgt1, delta=1.0, min_kernel_elems=0))
    ref1 = _reference(out1, tgt1, delta=1.0)
    assert jnp.allclose(loss1, ref1, rtol=1e-5, atol=1e-7), (loss1, ref1)

    # 2) Ragged case (n not a multiple of 128): fused XLA fallback, no padding.
    out2 = jax.random.normal(k3, (2, 3, 7, 5), dtype=jnp.float32)
    tgt2 = jax.random.uniform(k4, (2, 3, 7, 5), dtype=jnp.float32) + 0.5
    loss2 = jax.block_until_ready(norm_mse_loss(out2, tgt2, delta=1.0))
    ref2 = _reference(out2, tgt2, delta=1.0)
    assert jnp.allclose(loss2, ref2, rtol=1e-5, atol=1e-7), (loss2, ref2)

    # 3) Multi-block Pallas case with a partial last tile (rows=8320, tile=8192).
    out3 = jax.random.normal(k1, (8, 8, 128, 130), dtype=jnp.float32)
    tgt3 = jax.random.uniform(k2, (8, 8, 128, 130), dtype=jnp.float32) + 0.5
    loss3 = jax.block_until_ready(norm_mse_loss(out3, tgt3, delta=1.0))
    ref3 = _reference(out3, tgt3, delta=1.0)
    assert jnp.allclose(loss3, ref3, rtol=1e-5, atol=1e-6), (loss3, ref3)

    # 4) Same shape with an explicit 2-way core split (exercises the
    #    per-core partial-sum / overhang-mask path; serial loop on 1-TC parts).
    loss4 = jax.block_until_ready(
        norm_mse_loss(out3, tgt3, delta=1.0, num_cores=2))
    assert jnp.allclose(loss4, ref3, rtol=1e-5, atol=1e-6), (loss4, ref3)

    print("KERNEL_OK")
</pallas_src>

<mosaic_0001>
module attributes {stable_mosaic.version = 11 : i64} {
  func.func @_norm_mse_kernel(%arg0: i32, %arg1: i32, %arg2: memref<16x128xf32, #tpu.memory_space<vmem>>, %arg3: memref<16x128xf32, #tpu.memory_space<vmem>>, %arg4: memref<8x128xf32, #tpu.memory_space<vmem>>) attributes {dimension_semantics = [#tpu.dimension_semantics<parallel>, #tpu.dimension_semantics<arbitrary>], iteration_bounds = array<i64: 1, 1>, scalar_prefetch = 0 : i64, scratch_operands = 0 : i64, tpu.core_type = #tpu.core_type<tc>, window_params = [{transform_indices = @transform_0, window_bounds = array<i64: 16, 128>}, {transform_indices = @transform_1, window_bounds = array<i64: 16, 128>}, {transform_indices = @transform_2, window_bounds = array<i64: 8, 128>}]} {
    %c0_i32 = arith.constant 0 : i32
    %0 = arith.cmpi eq, %arg1, %c0_i32 : i32
    %1 = arith.extui %0 : i1 to i32
    %c0_i32_0 = arith.constant 0 : i32
    %2 = arith.cmpi ne, %1, %c0_i32_0 : i32
    scf.if %2 {
      %cst_9 = arith.constant 0.000000e+00 : f32
      %16 = vector.broadcast %cst_9 : f32 to vector<8x128xf32>
      %c0_10 = arith.constant 0 : index
      %c0_11 = arith.constant 0 : index
      %17 = vector.load %arg4[%c0_10, %c0_11] : memref<8x128xf32, #tpu.memory_space<vmem>>, vector<8x128xf32>
      tpu.vector_store %arg4[%c0_10, %c0_11], %16 {strides = array<i32>} : memref<8x128xf32, #tpu.memory_space<vmem>>, vector<8x128xf32>,
    } else {
    }
    %c0 = arith.constant 0 : index
    %c0_1 = arith.constant 0 : index
    %3 = vector.load %arg2[%c0, %c0_1] : memref<16x128xf32, #tpu.memory_space<vmem>>, vector<16x128xf32>
    %c0_2 = arith.constant 0 : index
    %c0_3 = arith.constant 0 : index
    %4 = vector.load %arg3[%c0_2, %c0_3] : memref<16x128xf32, #tpu.memory_space<vmem>>, vector<16x128xf32>
    %5 = arith.subf %3, %4 : vector<16x128xf32>
    %cst = arith.constant 1.000000e+00 : f32
    %6 = vector.broadcast %cst : f32 to vector<16x128xf32>
    %7 = arith.addf %4, %6 : vector<16x128xf32>
    %8 = tpu.reciprocal %7 : vector<16x128xf32> -> vector<16x128xf32>
    %9 = arith.mulf %5, %8 : vector<16x128xf32>
    %10 = arith.mulf %9, %9 : vector<16x128xf32>
    %c0_4 = arith.constant 0 : index
    %c0_5 = arith.constant 0 : index
    %11 = vector.load %arg4[%c0_4, %c0_5] : memref<8x128xf32, #tpu.memory_space<vmem>>, vector<8x128xf32>
    %12 = vector.shape_cast %10 : vector<16x128xf32> to vector<2x8x128xf32>
    %cst_6 = arith.constant dense<0.000000e+00> : vector<8x128xf32>
    %13 = vector.multi_reduction <add>, %12, %cst_6 [0] : vector<2x8x128xf32> to vector<8x128xf32>
    %14 = arith.addf %11, %13 : vector<8x128xf32>
    %c0_7 = arith.constant 0 : index
    %c0_8 = arith.constant 0 : index
    %15 = vector.load %arg4[%c0_7, %c0_8] : memref<8x128xf32, #tpu.memory_space<vmem>>, vector<8x128xf32>
    tpu.vector_store %arg4[%c0_7, %c0_8], %14 {strides = array<i32>} : memref<8x128xf32, #tpu.memory_space<vmem>>, vector<8x128xf32>,
    return
  }
  func.func @transform_0(%arg0: i32, %arg1: i32) -> (i32, i32) {
    %c1_i32 = arith.constant 1 : i32
    %0 = arith.muli %arg0, %c1_i32 : i32
    %1 = arith.addi %0, %arg1 : i32
    %c0_i32 = arith.constant 0 : i32
    %c0_i32_0 = arith.constant 0 : i32
    return %1, %c0_i32 : i32, i32
  }
  func.func @transform_1(%arg0: i32, %arg1: i32) -> (i32, i32) {
    %c1_i32 = arith.constant 1 : i32
    %0 = arith.muli %arg0, %c1_i32 : i32
    %1 = arith.addi %0, %arg1 : i32
    %c0_i32 = arith.constant 0 : i32
    %c0_i32_0 = arith.constant 0 : i32
    return %1, %c0_i32 : i32, i32
  }
  func.func @transform_2(%arg0: i32, %arg1: i32) -> (i32, i32) {
    %c0_i32 = arith.constant 0 : i32
    %c0_i32_0 = arith.constant 0 : i32
    return %arg0, %c0_i32 : i32, i32
  }
}

</mosaic_0001>

<llo_original>
// kernel: tpu_custom_call.1
$region0: #{tpu_custom_call.1}
  #allocation0 [shape = 'u32[]', space=smem, size = 0x4, offset = 0x4, fixed_abs, tag = 'smem constant byte address 0x4 - core index']
  #allocation1 [shape = 'u32[144,128]{1,0:T(1,128)}', space=vmem, size = 0x12000, scoped, tag = 'internal scratch']
  %s0 = inlined_call_operand.hbm [shape: f32[16,128], index: 0, kind: input, shape index: {}]
  %s1 = inlined_call_operand.hbm [shape: f32[16,128], index: 1, kind: input, shape index: {}]
  %s2 = inlined_call_operand.hbm [shape: f32[8,128], index: 2, kind: output, shape index: {}]
  %s3 = sld [smem:[#allocation0]]
  $region30: #{tpu_custom_call.1} parent=0
    _
  %s5 = ssub.s32 1, %s3
  %s6 = scalar_select 0, %s5, %s3
  $region1: #{tpu_custom_call.1} parent=0
    #allocation2 [shape = 'u8[8192]{0}', space=vmem, size = 0x2000, scoped, tag = 'input window, operand 0, single buffered']
    #allocation3 [shape = 's32[1]{0}', space=sflag, size = 0x4, scoped, tag = 'scoped memory for tpu_custom_call.1']
    #allocation4 [shape = 's32[1]{0}', space=sflag, size = 0x4, scoped, tag = 'scoped memory for tpu_custom_call.1']
    #allocation5 [shape = 'u8[8192]{0}', space=vmem, size = 0x2000, scoped, tag = 'input window, operand 1, single buffered']
    #allocation6 [shape = 's32[1]{0}', space=sflag, size = 0x4, scoped, tag = 'scoped memory for tpu_custom_call.1']
    #allocation7 [shape = 'u8[4096]{0}', space=vmem, size = 0x1000, scoped, tag = 'output window, operand 0, single buffered']
    %7 = vsyncpa [#allocation3], 0
    %8 = vsyncpa [#allocation6], 0
    %9 = vsyncpa [#allocation4], 0
    // Predicated region
    $region2: #{tpu_custom_call.1} parent=1 // pred_check
      _
    $region3: #{tpu_custom_call.1} parent=1 // pred_check_branch
      %11 = sbr.rel (0) target = $region5
    $region4: #{tpu_custom_call.1} parent=1 // pred_region
      %s12 = sadd.s32 0, 0
      %s13 = smul.u32 2, %s12
      %s15 = ssub.s32 256, 256
      %16 = vsyncadd [#allocation3], %s15
      %s17 = smul.addr %s13, 128
      %s18 = scalar_lea.hbm %s0, %s17
      %s19 = sshll.u32 [#allocation2], 4
      %s20 = int_to_ptr.vmem [resolvable:$true] %s19
      %25 = dma.hbm_to_vmem [thread:$0]  %s18, 256, %s20, [#allocation3], 128, 128, 8
    $region5: #{tpu_custom_call.1} parent=1 // pred_fallthru
      _
    // Predicated region
    $region6: #{tpu_custom_call.1} parent=1 // pred_check
      _
    $region7: #{tpu_custom_call.1} parent=1 // pred_check_branch
      %27 = sbr.rel (0) target = $region9
    $region8: #{tpu_custom_call.1} parent=1 // pred_region
      %s28 = sadd.s32 0, 0
      %s29 = smul.u32 2, %s28
      %s31 = ssub.s32 256, 256
      %32 = vsyncadd [#allocation6], %s31
      %s33 = smul.addr %s29, 128
      %s34 = scalar_lea.hbm %s1, %s33
      %s35 = sshll.u32 [#allocation5], 4
      %s36 = int_to_ptr.vmem [resolvable:$true] %s35
      %41 = dma.hbm_to_vmem [thread:$0]  %s34, 256, %s36, [#allocation6], 128, 128, 8
    $region9: #{tpu_custom_call.1} parent=1 // pred_fallthru
      _
    // Predicated region
    $region10: #{tpu_custom_call.1} parent=1 // pred_check
      _
    $region11: #{tpu_custom_call.1} parent=1 // pred_check_branch
      %43 = sbr.rel (0) target = $region13
    $region12: #{tpu_custom_call.1} parent=1 // pred_region
      %44 = dma.done [#allocation3], 256
    $region13: #{tpu_custom_call.1} parent=1 // pred_fallthru
      _
    // Predicated region
    $region14: #{tpu_custom_call.1} parent=1 // pred_check
      _
    $region15: #{tpu_custom_call.1} parent=1 // pred_check_branch
      %46 = sbr.rel (0) target = $region17
    $region16: #{tpu_custom_call.1} parent=1 // pred_region
      %47 = dma.done [#allocation6], 256
    $region17: #{tpu_custom_call.1} parent=1 // pred_fallthru
      _
    %s48 = sadd.s32 0, 0
    %s49 = smul.u32 2, %s48
    %s50 = sadd.s32 0, 0
    %s51 = smul.u32 2, %s50
    %p52 = scmp.eq.s32.totalorder 0, 0
    // Predicated region
    $region18: #{tpu_custom_call.1} parent=1 // pred_check
      %p53 = pneg %p52
    $region19: #{tpu_custom_call.1} parent=1 // pred_check_branch
      %55 = sbr.rel (%p53) target = $region21
    $region20: #{tpu_custom_call.1} parent=1 // pred_region
      %56 = vst [vmem:[#allocation7] sm:$0xff] 0.0
    $region21: #{tpu_custom_call.1} parent=1 // pred_fallthru
      _
    %v57 = vld [vmem:[#allocation2] sm:$0xff]
    %v58 = vld [vmem:[#allocation2 + $0x8] sm:$0xff]
    %v59 = vld [vmem:[#allocation5] sm:$0xff]
    %v60 = vld [vmem:[#allocation5 + $0x8] sm:$0xff]
    %v61 = vsub.f32 %v57, %v59
    %v62 = vsub.f32 %v58, %v60
    %v63 = vadd.f32 %v59, 1.0
    %v64 = vadd.f32 %v60, 1.0
    %v65 = vrcp.pop %v63
    %v66 = vrcp.pop %v64
    %v67 = vmul.f32 %v61, %v65
    %v68 = vmul.f32 %v62, %v66
    %v69 = vmul.f32 %v67, %v67
    %v70 = vmul.f32 %v68, %v68
    %v71 = vld [vmem:[#allocation7] sm:$0xff]
    %v72 = vadd.f32 %v69, %v70
    %v73 = vadd.f32 %v71, %v72
    %74 = vst [vmem:[#allocation7] sm:$0xff] %v73
    // Predicated region
    $region22: #{tpu_custom_call.1} parent=1 // pred_check
      _
    $region23: #{tpu_custom_call.1} parent=1 // pred_check_branch
      %76 = sbr.rel (0) target = $region25
    $region24: #{tpu_custom_call.1} parent=1 // pred_region
      %s78 = ssub.s32 128, 128
      %79 = vsyncadd [#allocation4], %s78
      %s81 = sshll.u32 [#allocation7], 4
      %s82 = int_to_ptr.vmem [resolvable:$true] %s81
      %84 = dma.vmem_to_hbm [thread:$0]  %s82, 128, %s2, [#allocation4]
    $region25: #{tpu_custom_call.1} parent=1 // pred_fallthru
      _
    // Predicated region
    $region26: #{tpu_custom_call.1} parent=1 // pred_check
      _
    $region27: #{tpu_custom_call.1} parent=1 // pred_check_branch
      %86 = sbr.rel (0) target = $region29
    $region28: #{tpu_custom_call.1} parent=1 // pred_region
      %87 = dma.done [#allocation4], 128
    $region29: #{tpu_custom_call.1} parent=1 // pred_fallthru
      _
    %88 = vsyncpa [#allocation3], 1
    %89 = vsyncpa [#allocation6], 1
    %90 = vsyncpa [#allocation4], 1

</llo_original>
